<compile_context>
chip_gen: v6e
topology: v6e:2x2x1
jax: 0.10.0
libtpu: 0.0.40
codegen_flags: <defaults>
</compile_context>

<pallas_src>
import jax
import jax.numpy as jnp
from jax.experimental import pallas as pl
from jax.experimental.pallas import tpu as pltpu


# ---------------- model config (word branch of CNN_Text) ----------------
V = 50            # embed_num
D = 32            # word_embed_dim
Co = 8            # kernel_num
Ks = (3, 4, 5)    # word_kernel_sizes
C = 5             # class_num
N = 2             # batch
L = 16            # sequence length
PAD_IDX = 1       # nn.Embedding(padding_idx=1)

KMIN = min(Ks)
KMAX = max(Ks)
T_MAX = L - KMIN + 1          # 14: time positions of the K=Kmin branch
L_PAD = T_MAX + KMAX - 1      # 18: zero-padded length so every Kmax window exists
CO_TOT = len(Ks) * Co         # 24: stacked conv output channels
F_DIM = CO_TOT                # fc1 input features


# ---------------- fused Pallas kernel ----------------
def _fused_kernel(tok_ref, embed_ref, wconv_ref, bconv_ref, fcw_ref, fcb_ref,
                  o_ref):
    """Fused embed -> (conv+relu+maxpool) x len(Ks) -> concat -> fc -> log_softmax.

    tok_ref   : (N*L, 1)         int32  token ids
    embed_ref : (V, D)           f32    embedding table (padding row zeroed)
    wconv_ref : (KMAX*D, CO_TOT) f32    stacked, zero-padded im2col conv weights
    bconv_ref : (1, CO_TOT)      f32    stacked conv biases
    fcw_ref   : (F_DIM, C)       f32    fc1 weight (stored transposed)
    fcb_ref   : (1, C)           f32    fc1 bias
    o_ref     : (N, C)           f32    log-probabilities
    """
    # ---- embedding gather as one-hot matmul (MXU; no dynamic indexing) ----
    tok = tok_ref[...]                                              # (N*L, 1) i32
    vocab_iota = jax.lax.broadcasted_iota(jnp.int32, (N * L, V), 1)
    onehot = (vocab_iota == tok).astype(jnp.float32)                # (N*L, V)
    x2d = jnp.dot(onehot, embed_ref[...],
                  preferred_element_type=jnp.float32)               # (N*L, D)

    # ---- im2col: all branches as ONE matmul over K*D contraction ----
    zero_rows = jnp.zeros((L_PAD - L, D), jnp.float32)
    win_parts = []
    for n in range(N):                                              # static, tiny
        x_n = jnp.concatenate([x2d[n * L:(n + 1) * L, :], zero_rows], axis=0)
        win_parts.append(
            jnp.concatenate([x_n[k:k + T_MAX, :] for k in range(KMAX)], axis=1))
    windows = jnp.concatenate(win_parts, axis=0)                    # (N*T_MAX, KMAX*D)

    acc = jnp.dot(windows, wconv_ref[...],
                  preferred_element_type=jnp.float32)               # (N*T_MAX, CO_TOT)
    acc = jnp.maximum(acc + bconv_ref[...], 0.0)                    # bias + ReLU

    # Per-branch valid-time mask (branch with kernel K has L-K+1 valid
    # positions).  Applied AFTER ReLU, so zeroing invalid rows cannot change
    # the (>= 0) max-pool result.
    t_iota = jax.lax.broadcasted_iota(jnp.int32, (T_MAX, Co), 0)
    mask = jnp.concatenate(
        [(t_iota < (L - K + 1)).astype(jnp.float32) for K in Ks], axis=1)
    acc = acc * jnp.concatenate([mask] * N, axis=0)                 # (N*T_MAX, CO_TOT)

    # ---- max-pool over time (cross-sublane reduce -> XLU), per batch row ----
    pooled = jnp.concatenate(
        [jnp.max(acc[n * T_MAX:(n + 1) * T_MAX, :], axis=0, keepdims=True)
         for n in range(N)], axis=0)                                # (N, CO_TOT)

    # TODO(synk): training-mode dropout (RNG mask) not implemented; eval-mode
    # dropout is the identity, which matches the inference forward pass.

    # ---- fc1 + log_softmax(dim=1) ----
    logits = jnp.dot(pooled, fcw_ref[...],
                     preferred_element_type=jnp.float32) + fcb_ref[...]
    m = jnp.max(logits, axis=-1, keepdims=True)
    s = logits - m
    lse = jnp.log(jnp.sum(jnp.exp(s), axis=-1, keepdims=True))
    o_ref[...] = s - lse


# ---------------- wrapper ----------------
def cnn_text_forward(tokens, params):
    """tokens (N, L) int -> log-probs (N, C) f32, in a single pallas_call."""
    tok2d = tokens.reshape(N * L, 1).astype(jnp.int32)
    flops = 2 * (N * L * V * D                      # one-hot gather matmul
                 + N * T_MAX * (KMAX * D) * CO_TOT  # fused conv matmul
                 + N * F_DIM * C)                   # fc1
    bytes_accessed = 4 * (N * L + V * D + KMAX * D * CO_TOT + CO_TOT
                          + F_DIM * C + C + N * C)
    return pl.pallas_call(
        _fused_kernel,
        out_shape=jax.ShapeDtypeStruct((N, C), jnp.float32),
        in_specs=[pl.BlockSpec(memory_space=pltpu.MemorySpace.VMEM)] * 6,
        out_specs=pl.BlockSpec(memory_space=pltpu.MemorySpace.VMEM),
        cost_estimate=pl.CostEstimate(flops=flops,
                                      transcendentals=N * (C + 1),
                                      bytes_accessed=bytes_accessed),
    )(tok2d, params["embed"], params["conv_w"], params["conv_b"],
      params["fc_w"], params["fc_b"])


# ---------------- deterministic parameter init ----------------
def init_params(key):
    keys = jax.random.split(key, 2 + len(Ks))
    # nn.Embedding default init: N(0, 1); padding_idx row zeroed.
    embed = jax.random.normal(keys[0], (V, D), jnp.float32)
    embed = embed.at[PAD_IDX].set(0.0)

    wcols, biases, raw_w, raw_b = [], [], {}, {}
    # word branch, ortho_init=False: weight ~ U(-0.01, 0.01), bias = 0
    for i, K in enumerate(Ks):
        w = jax.random.uniform(keys[1 + i], (Co, 1, K, D), jnp.float32,
                               minval=-0.01, maxval=0.01)   # torch (Co,Ci,K,D)
        wcol = w.reshape(Co, K * D).T                        # (K*D, Co) im2col
        wcol = jnp.concatenate(                              # zero-pad K -> KMAX
            [wcol, jnp.zeros(((KMAX - K) * D, Co), jnp.float32)], axis=0)
        wcols.append(wcol)
        biases.append(jnp.zeros((Co,), jnp.float32))
        raw_w[K] = jnp.transpose(w[:, 0, :, :], (1, 2, 0))   # (K, D, Co) for ref
        raw_b[K] = jnp.zeros((1, 1, Co), jnp.float32)

    conv_w = jnp.concatenate(wcols, axis=1)                  # (KMAX*D, CO_TOT)
    conv_b = jnp.concatenate(biases)[None, :]                # (1, CO_TOT)

    # fc1: weight ~ N(0,1)*0.01 (torch stores (C, F)); we store transposed.
    fc_w_torch = jax.random.normal(keys[-1], (C, F_DIM), jnp.float32) * 0.01
    fc_w = fc_w_torch.T
    fc_b = jnp.zeros((1, C), jnp.float32)

    params = {"embed": embed, "conv_w": conv_w, "conv_b": conv_b,
              "fc_w": fc_w, "fc_b": fc_b}
    raw = {"embed": embed, "conv_w": raw_w, "conv_b": raw_b,
           "fc_w": fc_w, "fc_b": fc_b}
    return params, raw


# ---------------- plain-JAX reference (mirrors the PyTorch forward) ----------------
def reference_forward(tokens, raw):
    x = jnp.take(raw["embed"], tokens, axis=0)               # (N, L, D)
    pooled = []
    for K in Ks:
        T = L - K + 1
        acc = jnp.zeros((N, T, Co), jnp.float32)
        for k in range(K):
            acc = acc + jnp.einsum("ntd,dc->ntc", x[:, k:k + T, :],
                                   raw["conv_w"][K][k])
        acc = jnp.maximum(acc + raw["conv_b"][K], 0.0)
        pooled.append(jnp.max(acc, axis=1))
    feat = jnp.concatenate(pooled, axis=1)                   # (N, len(Ks)*Co)
    logits = feat @ raw["fc_w"] + raw["fc_b"]
    return jax.nn.log_softmax(logits, axis=-1)


if __name__ == "__main__":
    key = jax.random.PRNGKey(0)
    pkey, tkey = jax.random.split(key)
    params, raw = init_params(pkey)
    tokens = jax.random.randint(tkey, (N, L), 0, V, dtype=jnp.int32)

    out = cnn_text_forward(tokens, params)
    jax.block_until_ready(out)
    assert out.shape == (N, C) and out.dtype == jnp.float32
    # sanity: rows of log_softmax exponentiate-and-sum to ~1
    assert bool(jnp.allclose(jnp.exp(out).sum(axis=1), 1.0, atol=1e-4))
    # matches the plain-JAX reference of the PyTorch forward
    ref = reference_forward(tokens, raw)
    assert bool(jnp.allclose(out, ref, atol=5e-3, rtol=5e-3))
    print("KERNEL_OK")
</pallas_src>

<mosaic_0001>
module attributes {stable_mosaic.version = 11 : i64} {
  func.func @_fused_kernel(%arg0: memref<32x1xi32, #tpu.memory_space<vmem>>, %arg1: memref<50x32xf32, #tpu.memory_space<vmem>>, %arg2: memref<160x24xf32, #tpu.memory_space<vmem>>, %arg3: memref<1x24xf32, #tpu.memory_space<vmem>>, %arg4: memref<24x5xf32, #tpu.memory_space<vmem>>, %arg5: memref<1x5xf32, #tpu.memory_space<vmem>>, %arg6: memref<2x5xf32, #tpu.memory_space<vmem>>) attributes {dimension_semantics = [], scalar_prefetch = 0 : i64, scratch_operands = 0 : i64, tpu.core_type = #tpu.core_type<tc>} {
    %c0 = arith.constant 0 : index
    %c0_0 = arith.constant 0 : index
    %0 = vector.load %arg0[%c0, %c0_0] : memref<32x1xi32, #tpu.memory_space<vmem>>, vector<32x1xi32>
    %1 = tpu.iota {dimensions = array<i32: 1>} : vector<32x50xi32>
    %2 = vector.broadcast %0 : vector<32x1xi32> to vector<32x50xi32>
    %3 = arith.cmpi eq, %1, %2 : vector<32x50xi32>
    %4 = arith.extui %3 : vector<32x50xi1> to vector<32x50xi32>
    %5 = arith.sitofp %4 : vector<32x50xi32> to vector<32x50xf32>
    %c0_1 = arith.constant 0 : index
    %c0_2 = arith.constant 0 : index
    %6 = vector.load %arg1[%c0_1, %c0_2] : memref<50x32xf32, #tpu.memory_space<vmem>>, vector<50x32xf32>
    %cst = arith.constant dense<0.000000e+00> : vector<32x32xf32>
    %7 = tpu.matmul %5, %6, %cst {dimension_numbers = #tpu.dot_dimension_numbers<[1], [0], [0], [1], [0, 0, 1, 1], [], []>} : vector<32x50xf32>, vector<50x32xf32>, vector<32x32xf32> -> vector<32x32xf32>
    %cst_3 = arith.constant 0.000000e+00 : f32
    %8 = vector.broadcast %cst_3 : f32 to vector<2x32xf32>
    %9 = vector.extract_strided_slice %7 {offsets = [0, 0], sizes = [16, 32], strides = [1, 1]} : vector<32x32xf32> to vector<16x32xf32>
    %10 = tpu.concatenate %9, %8 in 0 : vector<16x32xf32>, vector<2x32xf32> -> vector<18x32xf32>
    %11 = vector.extract_strided_slice %10 {offsets = [0, 0], sizes = [14, 32], strides = [1, 1]} : vector<18x32xf32> to vector<14x32xf32>
    %12 = vector.extract_strided_slice %10 {offsets = [1, 0], sizes = [14, 32], strides = [1, 1]} : vector<18x32xf32> to vector<14x32xf32>
    %13 = vector.extract_strided_slice %10 {offsets = [2, 0], sizes = [14, 32], strides = [1, 1]} : vector<18x32xf32> to vector<14x32xf32>
    %14 = vector.extract_strided_slice %10 {offsets = [3, 0], sizes = [14, 32], strides = [1, 1]} : vector<18x32xf32> to vector<14x32xf32>
    %15 = vector.extract_strided_slice %10 {offsets = [4, 0], sizes = [14, 32], strides = [1, 1]} : vector<18x32xf32> to vector<14x32xf32>
    %16 = tpu.concatenate %11, %12, %13, %14, %15 in 1 : vector<14x32xf32>, vector<14x32xf32>, vector<14x32xf32>, vector<14x32xf32>, vector<14x32xf32> -> vector<14x160xf32>
    %17 = vector.extract_strided_slice %7 {offsets = [16, 0], sizes = [16, 32], strides = [1, 1]} : vector<32x32xf32> to vector<16x32xf32>
    %18 = tpu.concatenate %17, %8 in 0 : vector<16x32xf32>, vector<2x32xf32> -> vector<18x32xf32>
    %19 = vector.extract_strided_slice %18 {offsets = [0, 0], sizes = [14, 32], strides = [1, 1]} : vector<18x32xf32> to vector<14x32xf32>
    %20 = vector.extract_strided_slice %18 {offsets = [1, 0], sizes = [14, 32], strides = [1, 1]} : vector<18x32xf32> to vector<14x32xf32>
    %21 = vector.extract_strided_slice %18 {offsets = [2, 0], sizes = [14, 32], strides = [1, 1]} : vector<18x32xf32> to vector<14x32xf32>
    %22 = vector.extract_strided_slice %18 {offsets = [3, 0], sizes = [14, 32], strides = [1, 1]} : vector<18x32xf32> to vector<14x32xf32>
    %23 = vector.extract_strided_slice %18 {offsets = [4, 0], sizes = [14, 32], strides = [1, 1]} : vector<18x32xf32> to vector<14x32xf32>
    %24 = tpu.concatenate %19, %20, %21, %22, %23 in 1 : vector<14x32xf32>, vector<14x32xf32>, vector<14x32xf32>, vector<14x32xf32>, vector<14x32xf32> -> vector<14x160xf32>
    %25 = tpu.concatenate %16, %24 in 0 : vector<14x160xf32>, vector<14x160xf32> -> vector<28x160xf32>
    %c0_4 = arith.constant 0 : index
    %c0_5 = arith.constant 0 : index
    %26 = vector.load %arg2[%c0_4, %c0_5] : memref<160x24xf32, #tpu.memory_space<vmem>>, vector<160x24xf32>
    %cst_6 = arith.constant dense<0.000000e+00> : vector<28x24xf32>
    %27 = tpu.matmul %25, %26, %cst_6 {dimension_numbers = #tpu.dot_dimension_numbers<[1], [0], [0], [1], [0, 0, 1, 1], [], []>} : vector<28x160xf32>, vector<160x24xf32>, vector<28x24xf32> -> vector<28x24xf32>
    %c0_7 = arith.constant 0 : index
    %c0_8 = arith.constant 0 : index
    %28 = vector.load %arg3[%c0_7, %c0_8] : memref<1x24xf32, #tpu.memory_space<vmem>>, vector<1x24xf32>
    %29 = vector.broadcast %28 : vector<1x24xf32> to vector<28x24xf32>
    %30 = arith.addf %27, %29 : vector<28x24xf32>
    %cst_9 = arith.constant 0.000000e+00 : f32
    %31 = vector.broadcast %cst_9 : f32 to vector<28x24xf32>
    %32 = arith.maximumf %30, %31 : vector<28x24xf32>
    %33 = tpu.iota {dimensions = array<i32: 0>} : vector<14x8xi32>
    %c14_i32 = arith.constant 14 : i32
    %34 = vector.broadcast %c14_i32 : i32 to vector<14x8xi32>
    %35 = arith.cmpi slt, %33, %34 : vector<14x8xi32>
    %36 = arith.extui %35 : vector<14x8xi1> to vector<14x8xi32>
    %37 = arith.sitofp %36 : vector<14x8xi32> to vector<14x8xf32>
    %c13_i32 = arith.constant 13 : i32
    %38 = vector.broadcast %c13_i32 : i32 to vector<14x8xi32>
    %39 = arith.cmpi slt, %33, %38 : vector<14x8xi32>
    %40 = arith.extui %39 : vector<14x8xi1> to vector<14x8xi32>
    %41 = arith.sitofp %40 : vector<14x8xi32> to vector<14x8xf32>
    %c12_i32 = arith.constant 12 : i32
    %42 = vector.broadcast %c12_i32 : i32 to vector<14x8xi32>
    %43 = arith.cmpi slt, %33, %42 : vector<14x8xi32>
    %44 = arith.extui %43 : vector<14x8xi1> to vector<14x8xi32>
    %45 = arith.sitofp %44 : vector<14x8xi32> to vector<14x8xf32>
    %46 = tpu.concatenate %37, %41, %45 in 1 : vector<14x8xf32>, vector<14x8xf32>, vector<14x8xf32> -> vector<14x24xf32>
    %47 = tpu.concatenate %46, %46 in 0 : vector<14x24xf32>, vector<14x24xf32> -> vector<28x24xf32>
    %48 = arith.mulf %32, %47 : vector<28x24xf32>
    %49 = vector.extract_strided_slice %48 {offsets = [0, 0], sizes = [14, 24], strides = [1, 1]} : vector<28x24xf32> to vector<14x24xf32>
    %cst_10 = arith.constant dense<0xFF800000> : vector<24xf32>
    %50 = vector.multi_reduction <maximumf>, %49, %cst_10 [0] : vector<14x24xf32> to vector<24xf32>
    %51 = vector.shape_cast %50 : vector<24xf32> to vector<1x24xf32>
    %52 = vector.extract_strided_slice %48 {offsets = [14, 0], sizes = [14, 24], strides = [1, 1]} : vector<28x24xf32> to vector<14x24xf32>
    %cst_11 = arith.constant dense<0xFF800000> : vector<24xf32>
    %53 = vector.multi_reduction <maximumf>, %52, %cst_11 [0] : vector<14x24xf32> to vector<24xf32>
    %54 = vector.shape_cast %53 : vector<24xf32> to vector<1x24xf32>
    %55 = tpu.concatenate %51, %54 in 0 : vector<1x24xf32>, vector<1x24xf32> -> vector<2x24xf32>
    %c0_12 = arith.constant 0 : index
    %c0_13 = arith.constant 0 : index
    %56 = vector.load %arg4[%c0_12, %c0_13] : memref<24x5xf32, #tpu.memory_space<vmem>>, vector<24x5xf32>
    %cst_14 = arith.constant dense<0.000000e+00> : vector<2x5xf32>
    %57 = tpu.matmul %55, %56, %cst_14 {dimension_numbers = #tpu.dot_dimension_numbers<[1], [0], [0], [1], [0, 0, 1, 1], [], []>} : vector<2x24xf32>, vector<24x5xf32>, vector<2x5xf32> -> vector<2x5xf32>
    %c0_15 = arith.constant 0 : index
    %c0_16 = arith.constant 0 : index
    %58 = vector.load %arg5[%c0_15, %c0_16] : memref<1x5xf32, #tpu.memory_space<vmem>>, vector<1x5xf32>
    %59 = vector.broadcast %58 : vector<1x5xf32> to vector<2x5xf32>
    %60 = arith.addf %57, %59 : vector<2x5xf32>
    %cst_17 = arith.constant dense<0xFF800000> : vector<2xf32>
    %61 = vector.multi_reduction <maximumf>, %60, %cst_17 [1] : vector<2x5xf32> to vector<2xf32>
    %62 = vector.shape_cast %61 : vector<2xf32> to vector<2x1xf32>
    %63 = vector.broadcast %62 : vector<2x1xf32> to vector<2x5xf32>
    %64 = arith.subf %60, %63 : vector<2x5xf32>
    %65 = math.exp %64 : vector<2x5xf32>
    %cst_18 = arith.constant dense<0.000000e+00> : vector<2xf32>
    %66 = vector.multi_reduction <add>, %65, %cst_18 [1] : vector<2x5xf32> to vector<2xf32>
    %67 = vector.shape_cast %66 : vector<2xf32> to vector<2x1xf32>
    %68 = math.log %67 : vector<2x1xf32>
    %69 = vector.broadcast %68 : vector<2x1xf32> to vector<2x5xf32>
    %70 = arith.subf %64, %69 : vector<2x5xf32>
    %c0_19 = arith.constant 0 : index
    %c0_20 = arith.constant 0 : index
    %71 = vector.load %arg6[%c0_19, %c0_20] : memref<2x5xf32, #tpu.memory_space<vmem>>, vector<2x5xf32>
    tpu.vector_store %arg6[%c0_19, %c0_20], %70 {strides = array<i32>} : memref<2x5xf32, #tpu.memory_space<vmem>>, vector<2x5xf32>,
    return
  }
}

</mosaic_0001>

<llo_original>
// kernel: tpu_custom_call.1
$region0: #{tpu_custom_call.1}
  #allocation0 [shape = 'u32[]', space=smem, size = 0x4, offset = 0x4, fixed_abs, tag = 'smem constant byte address 0x4 - core index']
  #allocation1 [shape = 'u32[144,128]{1,0:T(1,128)}', space=vmem, size = 0x12000, scoped, tag = 'internal scratch']
  %s0 = inlined_call_operand.vmem [shape: s32[32,1], index: 0, kind: input, shape index: {}]
  %s1 = inlined_call_operand.vmem [shape: f32[50,32], index: 1, kind: input, shape index: {}]
  %s2 = inlined_call_operand.vmem [shape: f32[160,24], index: 2, kind: input, shape index: {}]
  %s3 = inlined_call_operand.vmem [shape: f32[1,24], index: 3, kind: input, shape index: {}]
  %s4 = inlined_call_operand.vmem [shape: f32[24,5], index: 4, kind: input, shape index: {}]
  %s5 = inlined_call_operand.vmem [shape: f32[1,5], index: 5, kind: input, shape index: {}]
  %s6 = inlined_call_operand.hbm [shape: f32[2,5], index: 6, kind: output, shape index: {}]
  %s7 = sld [smem:[#allocation0]]
  $region34: #{tpu_custom_call.1} parent=0
    _
  %s9 = ssub.s32 1, %s7
  %s10 = scalar_select 0, %s9, %s7
  $region1: #{tpu_custom_call.1} parent=0
    #allocation2 [shape = 'u8[1024]{0}', space=vmem, size = 0x400, scoped, tag = 'output window, operand 0, single buffered']
    #allocation3 [shape = 's32[1]{0}', space=sflag, size = 0x4, scoped, tag = 'scoped memory for tpu_custom_call.1']
    %11 = vsyncpa [#allocation3], 0
    // Predicated region
    $region2: #{tpu_custom_call.1} parent=1 // pred_check
      _
    $region3: #{tpu_custom_call.1} parent=1 // pred_check_branch
      %13 = sbr.rel (0) target = $region5
    $region4: #{tpu_custom_call.1} parent=1 // pred_region
      _
    $region5: #{tpu_custom_call.1} parent=1 // pred_fallthru
      _
    // Predicated region
    $region6: #{tpu_custom_call.1} parent=1 // pred_check
      _
    $region7: #{tpu_custom_call.1} parent=1 // pred_check_branch
      %15 = sbr.rel (0) target = $region9
    $region8: #{tpu_custom_call.1} parent=1 // pred_region
      _
    $region9: #{tpu_custom_call.1} parent=1 // pred_fallthru
      _
    // Predicated region
    $region10: #{tpu_custom_call.1} parent=1 // pred_check
      _
    $region11: #{tpu_custom_call.1} parent=1 // pred_check_branch
      %17 = sbr.rel (0) target = $region13
    $region12: #{tpu_custom_call.1} parent=1 // pred_region
      _
    $region13: #{tpu_custom_call.1} parent=1 // pred_fallthru
      _
    // Predicated region
    $region14: #{tpu_custom_call.1} parent=1 // pred_check
      _
    $region15: #{tpu_custom_call.1} parent=1 // pred_check_branch
      %19 = sbr.rel (0) target = $region17
    $region16: #{tpu_custom_call.1} parent=1 // pred_region
      _
    $region17: #{tpu_custom_call.1} parent=1 // pred_fallthru
      _
    // Predicated region
    $region18: #{tpu_custom_call.1} parent=1 // pred_check
      _
    $region19: #{tpu_custom_call.1} parent=1 // pred_check_branch
      %21 = sbr.rel (0) target = $region21
    $region20: #{tpu_custom_call.1} parent=1 // pred_region
      _
    $region21: #{tpu_custom_call.1} parent=1 // pred_fallthru
      _
    // Predicated region
    $region22: #{tpu_custom_call.1} parent=1 // pred_check
      _
    $region23: #{tpu_custom_call.1} parent=1 // pred_check_branch
      %23 = sbr.rel (0) target = $region25
    $region24: #{tpu_custom_call.1} parent=1 // pred_region
      _
    $region25: #{tpu_custom_call.1} parent=1 // pred_fallthru
      _
    %v24 = vld [vmem:[%s0] sm:$0xff]
    %v25 = vld [vmem:[%s0 + $0x8] sm:$0xff]
    %v26 = vld [vmem:[%s0 + $0x10] sm:$0xff]
    %v27 = vld [vmem:[%s0 + $0x18] sm:$0xff]
    %v28 = vlaneseq
    %v29 = vand.u32 %v28, 127
    %30 = vset.pattern.permute.xlu0 0
    %31 = vperm.xlu0 %30, %v24
    %v32 = vpop.permute.xlu0 %31
    %33 = vset.pattern.permute.xlu0 0
    %34 = vperm.xlu0 %33, %v25
    %v35 = vpop.permute.xlu0 %34
    %36 = vset.pattern.permute.xlu0 0
    %37 = vperm.xlu0 %36, %v26
    %v38 = vpop.permute.xlu0 %37
    %39 = vset.pattern.permute.xlu0 0
    %40 = vperm.xlu0 %39, %v27
    %v41 = vpop.permute.xlu0 %40
    %vm42 = vcmp.eq.s32.totalorder %v29, %v32
    %vm43 = vcmp.eq.s32.totalorder %v29, %v35
    %vm44 = vcmp.eq.s32.totalorder %v29, %v38
    %vm45 = vcmp.eq.s32.totalorder %v29, %v41
    %v46 = vsel %vm42, 1, 0
    %v47 = vsel %vm43, 1, 0
    %v48 = vsel %vm44, 1, 0
    %v49 = vsel %vm45, 1, 0
    %v50 = vcvt.s32.f32 %v46
    %v51 = vcvt.s32.f32 %v47
    %v52 = vcvt.s32.f32 %v48
    %v53 = vcvt.s32.f32 %v49
    %v54 = vld [vmem:[%s1] sm:$0xff]
    %v55 = vld [vmem:[%s1 + $0x8] sm:$0xff]
    %v56 = vld [vmem:[%s1 + $0x10] sm:$0xff]
    %v57 = vld [vmem:[%s1 + $0x18] sm:$0xff]
    %v58 = vld [vmem:[%s1 + $0x20] sm:$0xff]
    %v59 = vld [vmem:[%s1 + $0x28] sm:$0xff]
    %v60 = vld [vmem:[%s1 + $0x30] sm:$0x3]
    %vm61 = vcmask 408576
    %v63 = vsel %vm61, %v50, 0
    %v66 = vsel %vm61, %v51, 0
    %v69 = vsel %vm61, %v52, 0
    %v72 = vsel %vm61, %v53, 0
    %vm74 = vcmask 1041408
    %v76 = vsel %vm74, %v60, 0
    %78 = vmatprep.subr.mxu0 0.0
    %79 = vmatpush1.msra.mxu0 0.0
    %80 = vmatprep.subr.mxu0 0.0
    %81 = vmatpush1.msra.mxu0 0.0
    %82 = vmatprep.subr.mxu0 0.0
    %83 = vmatpush1.msra.mxu0 0.0
    %84 = vmatprep.subr.mxu0 0.0
    %85 = vmatpush1.msra.mxu0 0.0
    %86 = vmatprep.subr.mxu0 0.0
    %87 = vmatpush1.msra.mxu0 0.0
    %88 = vmatprep.subr.mxu0 0.0
    %89 = vmatpush1.msra.mxu0 0.0
    %90 = vmatprep.subr.mxu0 0.0
    %91 = vmatpush1.msra.mxu0 0.0
    %92 = vmatprep.subr.mxu0 0.0
    %93 = vmatpush1.msra.mxu0 0.0
    %94 = vmatprep.subr.mxu0 0.0
    %95 = vmatpush1.msra.mxu0 0.0
    %96 = vmatprep.subr.mxu0 0.0
    %97 = vmatpush1.msra.mxu0 %v76
    %98 = vmatprep.subr.mxu0 0.0
    %99 = vmatpush1.msra.mxu0 %v59
    %100 = vmatprep.subr.mxu0 0.0
    %101 = vmatpush1.msra.mxu0 %v58
    %102 = vmatprep.subr.mxu0 0.0
    %103 = vmatpush1.msra.mxu0 %v57
    %104 = vmatprep.subr.mxu0 0.0
    %105 = vmatpush1.msra.mxu0 %v56
    %106 = vmatprep.subr.mxu0 0.0
    %107 = vmatpush1.msra.mxu0 %v55
    %108 = vmatprep.subr.mxu0 0.0
    %109 = vmatpush1.msra.mxu0 %v54
    %110 = vmatprep.subr.mxu0 0.0
    %111 = vmatpush2.msra.mxu0 0.0
    %112 = vmatprep.subr.mxu0 0.0
    %113 = vmatpush2.msra.mxu0 0.0
    %114 = vmatprep.subr.mxu0 0.0
    %115 = vmatpush2.msra.mxu0 0.0
    %116 = vmatprep.subr.mxu0 0.0
    %117 = vmatpush2.msra.mxu0 0.0
    %118 = vmatprep.subr.mxu0 0.0
    %119 = vmatpush2.msra.mxu0 0.0
    %120 = vmatprep.subr.mxu0 0.0
    %121 = vmatpush2.msra.mxu0 0.0
    %122 = vmatprep.subr.mxu0 0.0
    %123 = vmatpush2.msra.mxu0 0.0
    %124 = vmatprep.subr.mxu0 0.0
    %125 = vmatpush2.msra.mxu0 0.0
    %126 = vmatprep.subr.mxu0 0.0
    %127 = vmatpush2.msra.mxu0 0.0
    %128 = vmatprep.subr.mxu0 0.0
    %129 = vmatpush2.msra.mxu0 0.0
    %130 = vmatprep.subr.mxu0 0.0
    %131 = vmatpush2.msra.mxu0 0.0
    %132 = vmatprep.subr.mxu0 0.0
    %133 = vmatpush2.msra.mxu0 0.0
    %134 = vmatprep.subr.mxu0 0.0
    %135 = vmatpush2.msra.mxu0 0.0
    %136 = vmatprep.subr.mxu0 0.0
    %137 = vmatpush2.msra.mxu0 0.0
    %138 = vmatprep.subr.mxu0 0.0
    %139 = vmatpush2.msra.mxu0 0.0
    %140 = vmatprep.subr.mxu0 0.0
    %141 = vmatpush2.msra.mxu0 0.0
    %142 = vmatprep.mubr.f32.mxu0 0.0
    %143 = vmatmul.mubr.f32.gmra.mxu0 %v63
    %v144 = vpop.f32.mrf.mxu0
    %v145 = vadd.f32 0.0, %v144
    %v146 = vpop.f32.mrf.mxu0
    %147 = vmatprep.mubr.f32.mxu0 0.0
    %148 = vmatmul.mubr.f32.gmra.mxu0 %v66
    %v149 = vpop.f32.mrf.mxu0
    %v150 = vadd.f32 0.0, %v149
    %v151 = vpop.f32.mrf.mxu0
    %152 = vmatprep.mubr.f32.mxu0 0.0
    %153 = vmatmul.mubr.f32.gmra.mxu0 %v69
    %v154 = vpop.f32.mrf.mxu0
    %v155 = vadd.f32 0.0, %v154
    %v156 = vpop.f32.mrf.mxu0
    %157 = vmatprep.mubr.f32.mxu0 0.0
    %158 = vmatmul.mubr.f32.gmra.mxu0 %v72
    %v159 = vpop.f32.mrf.mxu0
    %v160 = vadd.f32 0.0, %v159
    %v161 = vpop.f32.mrf.mxu0
    %162 = vdwg.mxu0
    %vm165 = vcmask 1046528
    %v166 = vrot.slane %v145, 1
    %v167 = vrot.slane %v150, 1
    %v168 = vsel %vm165, %v166, %v167
    %169 = vrot.lane.b32.xlu0 %v168, 32
    %v170 = vpop.permute.xlu0 %169
    %171 = vrot.lane.b32.xlu0 %v167, 32
    %v172 = vpop.permute.xlu0 %171
    %vm175 = vcmask 1045504
    %v176 = vrot.slane %v145, 2
    %v177 = vrot.slane %v150, 2
    %v178 = vsel %vm175, %v176, %v177
    %179 = vrot.lane.b32.xlu0 %v178, 64
    %v180 = vpop.permute.xlu0 %179
    %181 = vrot.lane.b32.xlu0 %v177, 64
    %v182 = vpop.permute.xlu0 %181
    %vm186 = vcmask 1044480
    %v187 = vrot.slane %v145, 3
    %v188 = vrot.slane %v150, 3
    %v189 = vsel %vm186, %v187, %v188
    %v190 = vrot.slane 0.0, 3
    %v191 = vsel %vm186, %v188, %v190
    %192 = vrot.lane.b32.xlu0 %v189, 96
    %v193 = vpop.permute.xlu0 %192
    %194 = vrot.lane.b32.xlu0 %v191, 96
    %v195 = vpop.permute.xlu0 %194
    %vm198 = vcmask 1043456
    %v199 = vrot.slane %v145, 4
    %v200 = vrot.slane %v150, 4
    %v201 = vsel %vm198, %v199, %v200
    %v202 = vrot.slane 0.0, 4
    %v203 = vsel %vm198, %v200, %v202
    %vm205 = vcmask 261120
    %v206 = vsel %vm205, %v145, %v170
    %v207 = vsel %vm205, %v150, %v172
    %vm208 = vcmask 523264
    %v209 = vsel %vm208, %v206, %v180
    %v210 = vsel %vm208, %v207, %v182
    %vm211 = vcmask 785408
    %v212 = vsel %vm211, %v209, %v193
    %v213 = vsel %vm211, %v210, %v195
    %v216 = vrot.slane %v155, 1
    %v217 = vrot.slane %v160, 1
    %v218 = vsel %vm165, %v216, %v217
    %219 = vrot.lane.b32.xlu0 %v218, 32
    %v220 = vpop.permute.xlu0 %219
    %221 = vrot.lane.b32.xlu0 %v217, 32
    %v222 = vpop.permute.xlu0 %221
    %v225 = vrot.slane %v155, 2
    %v226 = vrot.slane %v160, 2
    %v227 = vsel %vm175, %v225, %v226
    %228 = vrot.lane.b32.xlu0 %v227, 64
    %v229 = vpop.permute.xlu0 %228
    %230 = vrot.lane.b32.xlu0 %v226, 64
    %v231 = vpop.permute.xlu0 %230
    %v234 = vrot.slane %v155, 3
    %v235 = vrot.slane %v160, 3
    %v236 = vsel %vm186, %v234, %v235
    %v237 = vsel %vm186, %v235, %v190
    %238 = vrot.lane.b32.xlu0 %v236, 96
    %v239 = vpop.permute.xlu0 %238
    %240 = vrot.lane.b32.xlu0 %v237, 96
    %v241 = vpop.permute.xlu0 %240
    %v244 = vrot.slane %v155, 4
    %v245 = vrot.slane %v160, 4
    %v246 = vsel %vm198, %v244, %v245
    %v247 = vsel %vm198, %v245, %v202
    %v248 = vsel %vm205, %v155, %v220
    %v249 = vsel %vm205, %v160, %v222
    %v250 = vsel %vm208, %v248, %v229
    %v251 = vsel %vm208, %v249, %v231
    %v252 = vsel %vm211, %v250, %v239
    %v253 = vsel %vm211, %v251, %v241
    %v256 = vrot.slane %v252, 2
    %v257 = vrot.slane %v246, 2
    %v258 = vrot.slane %v253, 2
    %v259 = vsel %vm175, %v256, %v258
    %v260 = vrot.slane %v247, 2
    %v261 = vsel %vm175, %v257, %v260
    %v266 = vsel %vm175, %v213, %v256
    %v267 = vsel %vm175, %v203, %v257
    %v268 = vld [vmem:[%s2] sm:$0xff]
    %v269 = vld [vmem:[%s2 + $0x8] sm:$0xff]
    %v270 = vld [vmem:[%s2 + $0x10] sm:$0xff]
    %v271 = vld [vmem:[%s2 + $0x18] sm:$0xff]
    %v272 = vld [vmem:[%s2 + $0x20] sm:$0xff]
    %v273 = vld [vmem:[%s2 + $0x28] sm:$0xff]
    %v274 = vld [vmem:[%s2 + $0x30] sm:$0xff]
    %v275 = vld [vmem:[%s2 + $0x38] sm:$0xff]
    %v276 = vld [vmem:[%s2 + $0x40] sm:$0xff]
    %v277 = vld [vmem:[%s2 + $0x48] sm:$0xff]
    %v278 = vld [vmem:[%s2 + $0x50] sm:$0xff]
    %v279 = vld [vmem:[%s2 + $0x58] sm:$0xff]
    %v280 = vld [vmem:[%s2 + $0x60] sm:$0xff]
    %v281 = vld [vmem:[%s2 + $0x68] sm:$0xff]
    %v282 = vld [vmem:[%s2 + $0x70] sm:$0xff]
    %v283 = vld [vmem:[%s2 + $0x78] sm:$0xff]
    %v284 = vld [vmem:[%s2 + $0x80] sm:$0xff]
    %v285 = vld [vmem:[%s2 + $0x88] sm:$0xff]
    %v286 = vld [vmem:[%s2 + $0x90] sm:$0xff]
    %v287 = vld [vmem:[%s2 + $0x98] sm:$0xff]
    %v288 = vld [vmem:[%s3] sm:$0x1]
    %v290 = vlaneseq
    %v291 = vshrl.u32 %v290, 7
    %v292 = vsub.s32 0, %v291
    %v293 = vrot.slane %v288, %v292
    %v295 = vsel %vm205, %v201, 0
    %v298 = vsel %vm205, %v267, 0
    %v300 = vsel %vm205, %v261, 0
    %v302 = vsel %vm205, %v260, 0
    %304 = vmatprep.subr.mxu0 0.0
    %305 = vmatpush1.msra.mxu0 %v283
    %306 = vmatprep.subr.mxu0 0.0
    %307 = vmatpush1.msra.mxu0 %v282
    %308 = vmatprep.subr.mxu0 0.0
    %309 = vmatpush1.msra.mxu0 %v281
    %310 = vmatprep.subr.mxu0 0.0
    %311 = vmatpush1.msra.mxu0 %v280
    %312 = vmatprep.subr.mxu0 0.0
    %313 = vmatpush1.msra.mxu0 %v279
    %314 = vmatprep.subr.mxu0 0.0
    %315 = vmatpush1.msra.mxu0 %v278
    %316 = vmatprep.subr.mxu0 0.0
    %317 = vmatpush1.msra.mxu0 %v277
    %318 = vmatprep.subr.mxu0 0.0
    %319 = vmatpush1.msra.mxu0 %v276
    %320 = vmatprep.subr.mxu0 0.0
    %321 = vmatpush1.msra.mxu0 %v275
    %322 = vmatprep.subr.mxu0 0.0
    %323 = vmatpush1.msra.mxu0 %v274
    %324 = vmatprep.subr.mxu0 0.0
    %325 = vmatpush1.msra.mxu0 %v273
    %326 = vmatprep.subr.mxu0 0.0
    %327 = vmatpush1.msra.mxu0 %v272
    %328 = vmatprep.subr.mxu0 0.0
    %329 = vmatpush1.msra.mxu0 %v271
    %330 = vmatprep.subr.mxu0 0.0
    %331 = vmatpush1.msra.mxu0 %v270
    %332 = vmatprep.subr.mxu0 0.0
    %333 = vmatpush1.msra.mxu0 %v269
    %334 = vmatprep.subr.mxu0 0.0
    %335 = vmatpush1.msra.mxu0 %v268
    %336 = vmatprep.subr.mxu0 0.0
    %337 = vmatpush2.msra.mxu0 0.0
    %338 = vmatprep.subr.mxu0 0.0
    %339 = vmatpush2.msra.mxu0 0.0
    %340 = vmatprep.subr.mxu0 0.0
    %341 = vmatpush2.msra.mxu0 0.0
    %342 = vmatprep.subr.mxu0 0.0
    %343 = vmatpush2.msra.mxu0 0.0
    %344 = vmatprep.subr.mxu0 0.0
    %345 = vmatpush2.msra.mxu0 0.0
    %346 = vmatprep.subr.mxu0 0.0
    %347 = vmatpush2.msra.mxu0 0.0
    %348 = vmatprep.subr.mxu0 0.0
    %349 = vmatpush2.msra.mxu0 0.0
    %350 = vmatprep.subr.mxu0 0.0
    %351 = vmatpush2.msra.mxu0 0.0
    %352 = vmatprep.subr.mxu0 0.0
    %353 = vmatpush2.msra.mxu0 0.0
    %354 = vmatprep.subr.mxu0 0.0
    %355 = vmatpush2.msra.mxu0 0.0
    %356 = vmatprep.subr.mxu0 0.0
    %357 = vmatpush2.msra.mxu0 0.0
    %358 = vmatprep.subr.mxu0 0.0
    %359 = vmatpush2.msra.mxu0 0.0
    %360 = vmatprep.subr.mxu0 0.0
    %361 = vmatpush2.msra.mxu0 %v287
    %362 = vmatprep.subr.mxu0 0.0
    %363 = vmatpush2.msra.mxu0 %v286
    %364 = vmatprep.subr.mxu0 0.0
    %365 = vmatpush2.msra.mxu0 %v285
    %366 = vmatprep.subr.mxu0 0.0
    %367 = vmatpush2.msra.mxu0 %v284
    %368 = vmatprep.mubr.f32.mxu0 %v295
    %369 = vmatmul.mubr.f32.gmra.mxu0 %v212
    %v370 = vpop.f32.mrf.mxu0
    %v371 = vadd.f32 %v293, %v370
    %v372 = vpop.f32.mrf.mxu0
    %373 = vmatprep.mubr.f32.mxu0 %v298
    %374 = vmatmul.mubr.f32.gmra.mxu0 %v266
    %v375 = vpop.f32.mrf.mxu0
    %v376 = vadd.f32 %v293, %v375
    %v377 = vpop.f32.mrf.mxu0
    %378 = vmatprep.mubr.f32.mxu0 %v300
    %379 = vmatmul.mubr.f32.gmra.mxu0 %v259
    %v380 = vpop.f32.mrf.mxu0
    %v381 = vadd.f32 %v293, %v380
    %v382 = vpop.f32.mrf.mxu0
    %383 = vmatprep.mubr.f32.mxu0 %v302
    %384 = vmatmul.mubr.f32.gmra.mxu0 %v258
    %v385 = vpop.f32.mrf.mxu0
    %v386 = vadd.f32 %v293, %v385
    %v387 = vpop.f32.mrf.mxu0
    %388 = vdwg.mxu0
    %v389 = vmax.f32 %v371, 0.0
    %v390 = vmax.f32 %v376, 0.0
    %v391 = vmax.f32 %v381, 0.0
    %v392 = vmax.f32 %v386, 0.0
    %v393 = vlaneseq
    %v394 = vshrl.u32 %v393, 7
    %v395 = vadd.s32 %v394, 8
    %vm396 = vcmp.lt.s32.totalorder %v394, 14
    %vm397 = vcmp.lt.s32.totalorder %v395, 14
    %v398 = vsel %vm396, 1, 0
    %v399 = vsel %vm397, 1, 0
    %v400 = vcvt.s32.f32 %v398
    %v401 = vcvt.s32.f32 %v399
    %vm402 = vcmp.lt.s32.totalorder %v394, 13
    %vm403 = vcmp.lt.s32.totalorder %v395, 13
    %v404 = vsel %vm402, 1, 0
    %v405 = vsel %vm403, 1, 0
    %v406 = vcvt.s32.f32 %v404
    %v407 = vcvt.s32.f32 %v405
    %vm408 = vcmp.lt.s32.totalorder %v394, 12
    %vm409 = vcmp.lt.s32.totalorder %v395, 12
    %v410 = vsel %vm408, 1, 0
    %v411 = vsel %vm409, 1, 0
    %v412 = vcvt.s32.f32 %v410
    %v413 = vcvt.s32.f32 %v411
    %vm414 = vcmask 64512
    %v415 = vsel %vm414, %v400, %v406
    %v416 = vsel %vm414, %v401, %v407
    %vm417 = vcmask 130048
    %v418 = vsel %vm417, %v415, %v412
    %v419 = vsel %vm417, %v416, %v413
    %v422 = vrot.slane %v418, 2
    %v423 = vrot.slane %v419, 2
    %v424 = vsel %vm175, %v422, %v423
    %v428 = vsel %vm175, %v419, %v422
    %v429 = vmul.f32 %v389, %v418
    %v430 = vmul.f32 %v390, %v428
    %v431 = vmul.f32 %v391, %v424
    %v432 = vmul.f32 %v392, %v423
    %vm433 = vcmask 195584
    %v434 = vsel %vm433, %v429, -inf
    %vm435 = vcmask 193536
    %v436 = vsel %vm435, %v430, -inf
    %v437 = vmax.f32 %v434, %v436
    %v438 = vrot.slane %v437, 4
    %v439 = vmax.f32 %v437, %v438
    %v440 = vrot.slane %v439, 2
    %v441 = vmax.f32 %v439, %v440
    %v442 = vrot.slane %v441, 1
    %v443 = vmax.f32 %v441, %v442
    %vm444 = vcmask 195590
    %v445 = vsel %vm444, %v430, -inf
    %v446 = vsel %vm433, %v431, -inf
    %vm447 = vcmask 191488
    %v448 = vsel %vm447, %v432, -inf
    %v449 = vmax.f32 %v445, %v446
    %v450 = vmax.f32 %v449, %v448
    %v451 = vrot.slane %v450, 4
    %v452 = vmax.f32 %v450, %v451
    %v453 = vrot.slane %v452, 2
    %v454 = vmax.f32 %v452, %v453
    %v455 = vrot.slane %v454, 1
    %v456 = vmax.f32 %v454, %v455
    %vm457 = vcmask 1040384
    %v458 = vsel %vm457, %v443, %v456
    %v459 = vld [vmem:[%s4] sm:$0xff]
    %v460 = vld [vmem:[%s4 + $0x8] sm:$0xff]
    %v461 = vld [vmem:[%s4 + $0x10] sm:$0xff]
    %v462 = vld [vmem:[%s5] sm:$0x1]
    %v464 = vlaneseq
    %v465 = vshrl.u32 %v464, 7
    %v466 = vsub.s32 0, %v465
    %v467 = vrot.slane %v462, %v466
    %v470 = vsel %vm433, %v458, 0
    %472 = vmatprep.subr.mxu0 0.0
    %473 = vmatpush1.msra.mxu0 0.0
    %474 = vmatprep.subr.mxu0 0.0
    %475 = vmatpush1.msra.mxu0 0.0
    %476 = vmatprep.subr.mxu0 0.0
    %477 = vmatpush1.msra.mxu0 0.0
    %478 = vmatprep.subr.mxu0 0.0
    %479 = vmatpush1.msra.mxu0 0.0
    %480 = vmatprep.subr.mxu0 0.0
    %481 = vmatpush1.msra.mxu0 0.0
    %482 = vmatprep.subr.mxu0 0.0
    %483 = vmatpush1.msra.mxu0 0.0
    %484 = vmatprep.subr.mxu0 0.0
    %485 = vmatpush1.msra.mxu0 0.0
    %486 = vmatprep.subr.mxu0 0.0
    %487 = vmatpush1.msra.mxu0 0.0
    %488 = vmatprep.subr.mxu0 0.0
    %489 = vmatpush1.msra.mxu0 0.0
    %490 = vmatprep.subr.mxu0 0.0
    %491 = vmatpush1.msra.mxu0 0.0
    %492 = vmatprep.subr.mxu0 0.0
    %493 = vmatpush1.msra.mxu0 0.0
    %494 = vmatprep.subr.mxu0 0.0
    %495 = vmatpush1.msra.mxu0 0.0
    %496 = vmatprep.subr.mxu0 0.0
    %497 = vmatpush1.msra.mxu0 0.0
    %498 = vmatprep.subr.mxu0 0.0
    %499 = vmatpush1.msra.mxu0 %v461
    %500 = vmatprep.subr.mxu0 0.0
    %501 = vmatpush1.msra.mxu0 %v460
    %502 = vmatprep.subr.mxu0 0.0
    %503 = vmatpush1.msra.mxu0 %v459
    %504 = vmatprep.subr.mxu0 0.0
    %505 = vmatpush2.msra.mxu0 0.0
    %506 = vmatprep.subr.mxu0 0.0
    %507 = vmatpush2.msra.mxu0 0.0
    %508 = vmatprep.subr.mxu0 0.0
    %509 = vmatpush2.msra.mxu0 0.0
    %510 = vmatprep.subr.mxu0 0.0
    %511 = vmatpush2.msra.mxu0 0.0
    %512 = vmatprep.subr.mxu0 0.0
    %513 = vmatpush2.msra.mxu0 0.0
    %514 = vmatprep.subr.mxu0 0.0
    %515 = vmatpush2.msra.mxu0 0.0
    %516 = vmatprep.subr.mxu0 0.0
    %517 = vmatpush2.msra.mxu0 0.0
    %518 = vmatprep.subr.mxu0 0.0
    %519 = vmatpush2.msra.mxu0 0.0
    %520 = vmatprep.subr.mxu0 0.0
    %521 = vmatpush2.msra.mxu0 0.0
    %522 = vmatprep.subr.mxu0 0.0
    %523 = vmatpush2.msra.mxu0 0.0
    %524 = vmatprep.subr.mxu0 0.0
    %525 = vmatpush2.msra.mxu0 0.0
    %526 = vmatprep.subr.mxu0 0.0
    %527 = vmatpush2.msra.mxu0 0.0
    %528 = vmatprep.subr.mxu0 0.0
    %529 = vmatpush2.msra.mxu0 0.0
    %530 = vmatprep.subr.mxu0 0.0
    %531 = vmatpush2.msra.mxu0 0.0
    %532 = vmatprep.subr.mxu0 0.0
    %533 = vmatpush2.msra.mxu0 0.0
    %534 = vmatprep.subr.mxu0 0.0
    %535 = vmatpush2.msra.mxu0 0.0
    %536 = vmatprep.mubr.f32.mxu0 0.0
    %537 = vmatmul.mubr.f32.gmra.mxu0 %v470
    %v538 = vpop.f32.mrf.mxu0
    %v539 = vadd.f32 %v467, %v538
    %v540 = vpop.f32.mrf.mxu0
    %541 = vdwg.mxu0
    %vm542 = vcmask 33792
    %v543 = vsel %vm542, %v539, -inf
    %544 = vmax.xlane.f32.xlu0 %v543
    %v545 = vpop.xlane.xlu0 %544
    %v546 = vsub.f32 %v539, %v545
    %v547 = vmul.f32 %v546, 1.442695
    %v548 = vpow.pop %v547
    %v549 = vsel %vm542, %v548, 0.0
    %550 = vadd.xlane.f32.xlu0 %v549
    %v551 = vpop.xlane.xlu0 %550
    %v552 = vlog2.pop %v551
    %v553 = vmul.f32 %v552, 0.6931472
    %v554 = vsub.f32 %v546, %v553
    %555 = vst.msk [vmem:[#allocation2] sm:$0x3] %vm542, %v554
    // Predicated region
    $region26: #{tpu_custom_call.1} parent=1 // pred_check
      _
    $region27: #{tpu_custom_call.1} parent=1 // pred_check_branch
      %557 = sbr.rel (0) target = $region29
    $region28: #{tpu_custom_call.1} parent=1 // pred_region
      %s559 = ssub.s32 32, 32
      %560 = vsyncadd [#allocation3], %s559
      %s562 = sshll.u32 [#allocation2], 4
      %s563 = int_to_ptr.vmem [resolvable:$true] %s562
      %565 = dma.vmem_to_hbm [thread:$0]  %s563, 32, %s6, [#allocation3]
    $region29: #{tpu_custom_call.1} parent=1 // pred_fallthru
      _
    // Predicated region
    $region30: #{tpu_custom_call.1} parent=1 // pred_check
      _
    $region31: #{tpu_custom_call.1} parent=1 // pred_check_branch
      %567 = sbr.rel (0) target = $region33
    $region32: #{tpu_custom_call.1} parent=1 // pred_region
      %568 = dma.done [#allocation3], 32
    $region33: #{tpu_custom_call.1} parent=1 // pred_fallthru
      _
    %569 = vsyncpa [#allocation3], 1

</llo_original>
